<compile_context>
chip_gen: v7x
topology: tpu7x:2x2x1
jax: 0.10.0
libtpu: 0.0.40
codegen_flags: <defaults>
</compile_context>

<pallas_src>
import jax
import jax.numpy as jnp
from jax import lax
from jax.experimental import pallas as pl
from jax.experimental.pallas import tpu as pltpu


def _l2_normalize(z):
    # Matches F.cosine_similarity's behavior (norm clamped at 1e-8).
    n = jnp.sqrt(jnp.sum(z * z, axis=-1, keepdims=True))
    return z / jnp.maximum(n, 1e-8)


def _device_flavor():
    try:
        return jax.devices()[0].device_kind.lower()
    except Exception:
        return ""


def _has_bf16_eup():
    # bf16 transcendentals exist on v6e / v7x; v5e and older: f32 only.
    return any(t in _device_flavor() for t in ("v6", "v7", "7x"))


def _choose_block_q(n, preferred):
    """Row tile: 8-aligned divisor of n, <= preferred, and >= 2 row tiles when
    n allows so both v7x TensorCores get work on the 'parallel' axis."""
    cap = preferred
    if n >= 16:
        cap = min(cap, max(8, n // 2))
    if n <= cap:
        return n
    for t in range(cap, 7, -1):
        if n % t == 0 and t % 8 == 0:
            return t
    return n  # fall back to a single full-extent tile (always legal)


def _choose_block_k(m, preferred):
    """Column tile over the merged 2N key rows: prefer multiples of 128 (MXU
    output lane dim), fall back to multiples of 8, then the full extent."""
    # TODO(synk): a pad+mask fallback would avoid tiny divisors for awkward N.
    if m <= preferred:
        return m
    for t in range(min(preferred, m), 127, -1):
        if m % t == 0 and t % 128 == 0:
            return t
    for t in range(min(preferred, m), 7, -1):
        if m % t == 0 and t % 8 == 0:
            return t
    return m


def _make_kernel(inv_temp, temperature, exp_dtype):
    """Kernel closure over the (Python float) temperature and the exp dtype."""

    def kernel(qi_ref, qj_ref, k_ref, oi_ref, oj_ref, l_i, l_j):
        k_idx = pl.program_id(1)

        @pl.when(k_idx == 0)
        def _init():
            l_i[...] = jnp.zeros(l_i.shape, dtype=l_i.dtype)
            l_j[...] = jnp.zeros(l_j.shape, dtype=l_j.dtype)

        dn = (((1,), (1,)), ((), ()))  # contract dim 1 of both: A @ B^T, no transpose
        kt = k_ref[...]                # merged key tile (bk, D), covers z_i|z_j columns

        def _accum(q, l_ref):
            s = lax.dot_general(q, kt, dn, preferred_element_type=jnp.float32)
            # Fixed max m = 1/T (scores bounded by 1/T); bf16 exp where available.
            e = jnp.exp((s - inv_temp).astype(exp_dtype))
            l_ref[...] += jnp.sum(e.astype(jnp.float32), axis=1, keepdims=True)

        _accum(qi_ref[...], l_i)
        _accum(qj_ref[...], l_j)

        @pl.when(k_idx == pl.num_programs(1) - 1)
        def _finalize():
            qi32 = qi_ref[...].astype(jnp.float32)
            qj32 = qj_ref[...].astype(jnp.float32)
            # Positive / diagonal logits recovered from the resident query
            # tiles in O(bq*D): queries carry 1/T, so multiply by T once.
            p = temperature * jnp.sum(qi32 * qj32, axis=-1, keepdims=True)
            d_i = temperature * jnp.sum(qi32 * qi32, axis=-1, keepdims=True)
            d_j = temperature * jnp.sum(qj32 * qj32, axis=-1, keepdims=True)

            def _row_loss(l_ref, d):
                # l holds every column incl. the diagonal; the PyTorch module
                # removes only the diagonal from the negatives and prepends the
                # positive, so: denom = (l - exp(d-m)) + exp(p-m).
                denom = jnp.maximum(l_ref[...] - jnp.exp(d - inv_temp), 0.0) \
                        + jnp.exp(p - inv_temp)
                return (inv_temp + jnp.log(denom)) - p

            oi_ref[...] = _row_loss(l_i, d_i)
            oj_ref[...] = _row_loss(l_j, d_j)

    return kernel


def nt_xent_loss(z_i, z_j, temperature, *, block_q=None, block_k=None,
                 matmul_dtype=jnp.bfloat16, exp_dtype=None):
    """NT-Xent loss, same semantics as the reference PyTorch module."""
    if z_i.ndim != 2 or z_i.shape != z_j.shape:
        raise ValueError("z_i and z_j must both be (N, D)")
    N, D = z_i.shape
    M = 2 * N
    inv_temp = 1.0 / float(temperature)
    if inv_temp > 32.0:
        # Fixed-max formulation needs exp(s - 1/T) with s >= -1/T to stay in
        # the f32 exp range; extreme temperatures (T < ~0.03) are out of scope.
        raise ValueError("temperature too small for the fixed-max NT-Xent kernel")

    fast_eup = _has_bf16_eup()
    if exp_dtype is None:
        exp_dtype = jnp.bfloat16 if fast_eup else jnp.float32

    zni = _l2_normalize(z_i.astype(jnp.float32))
    znj = _l2_normalize(z_j.astype(jnp.float32))

    # Query side carries the 1/T factor; key side is one merged (2N, D) stream.
    # XLA fuses normalize / scale / cast / concat into one pass over the inputs.
    q_i = (zni * inv_temp).astype(matmul_dtype)
    q_j = (znj * inv_temp).astype(matmul_dtype)
    k = jnp.concatenate([zni, znj], axis=0).astype(matmul_dtype)

    bq = block_q if block_q is not None else _choose_block_q(N, 512 if fast_eup else 256)
    bk = block_k if block_k is not None else _choose_block_k(M, 512)
    if N % bq != 0 or M % bk != 0:
        raise ValueError("block sizes must divide N (rows) / 2N (columns)")

    itemsize = jnp.dtype(matmul_dtype).itemsize

    def _vmem_est(bq_, bk_):
        inp = 2 * (2 * bq_ * D + bk_ * D) * itemsize      # double-buffered q_i, q_j, key tile
        outs = (2 * 2 * bq_ * 128 + 2 * bq_ * 128) * 4    # (bq,1) outs (lane-padded) + scratch
        tmp = 6 * bq_ * bk_ * 4                           # score / exp temporaries (headroom)
        return inp + outs + tmp

    # Shrink the key tile (never the query tile) if very large D would blow the
    # VMEM budget (v7x has only 64 MiB physical).
    if block_k is None:
        pref = bk
        while _vmem_est(bq, bk) > 40 * 2**20 and pref > 128:
            pref //= 2
            bk = _choose_block_k(M, pref)
    vmem_limit = int(min(48 * 2**20, max(32 * 2**20, 2 * _vmem_est(bq, bk))))

    grid = (N // bq, M // bk)

    q_spec = pl.BlockSpec((bq, D), lambda q, c: (q, 0))
    k_spec = pl.BlockSpec((bk, D), lambda q, c: (c, 0))
    o_spec = pl.BlockSpec((bq, 1), lambda q, c: (q, 0))

    kernel = _make_kernel(inv_temp, float(temperature), exp_dtype)

    loss_i, loss_j = pl.pallas_call(
        kernel,
        out_shape=(jax.ShapeDtypeStruct((N, 1), jnp.float32),
                   jax.ShapeDtypeStruct((N, 1), jnp.float32)),
        grid=grid,
        in_specs=[q_spec, q_spec, k_spec],
        out_specs=(o_spec, o_spec),
        scratch_shapes=[pltpu.VMEM((bq, 1), jnp.float32) for _ in range(2)],
        compiler_params=pltpu.CompilerParams(
            dimension_semantics=("parallel", "arbitrary"),
            vmem_limit_bytes=vmem_limit),
    )(q_i, q_j, k)

    return (jnp.sum(loss_i) + jnp.sum(loss_j)) / jnp.float32(M)


def _reference(z_i, z_j, temperature, matmul_dtype=jnp.float32):
    """Pure-JAX mirror of the PyTorch forward (optionally emulating bf16 MXU inputs)."""
    N = z_i.shape[0]
    M = 2 * N
    zn = _l2_normalize(jnp.concatenate([z_i, z_j], axis=0).astype(jnp.float32))
    q = (zn * (1.0 / float(temperature))).astype(matmul_dtype).astype(jnp.float32)
    k = zn.astype(matmul_dtype).astype(jnp.float32)
    sim = jnp.matmul(q, k.T, precision=lax.Precision.HIGHEST)
    pos = sim[jnp.arange(M), (jnp.arange(M) + N) % M]
    eye = jnp.eye(M, dtype=bool)
    neg = sim[~eye].reshape(M, M - 1)          # diagonal removed, positive kept
    logits = jnp.concatenate([pos[:, None], neg], axis=1)
    lse = jax.scipy.special.logsumexp(logits, axis=1)
    return jnp.mean(lse - logits[:, 0])


if __name__ == "__main__":
    temperature = 0.5

    def check(N, D, block_q=None, block_k=None):
        key = jax.random.PRNGKey(0)
        k1, k2 = jax.random.split(key)
        z_i = jax.random.normal(k1, (N, D), dtype=jnp.float32)
        z_j = jax.random.normal(k2, (N, D), dtype=jnp.float32)

        ref_f32 = _reference(z_i, z_j, temperature)
        ref_bf16 = _reference(z_i, z_j, temperature, matmul_dtype=jnp.bfloat16)

        # performance path: bf16 MXU + (bf16 exp on v6e/v7x, f32 exp elsewhere)
        loss_perf = jax.block_until_ready(
            nt_xent_loss(z_i, z_j, temperature, block_q=block_q, block_k=block_k))
        # validation path: f32 matmul + f32 exp, checks the kernel math exactly
        loss_f32 = jax.block_until_ready(
            nt_xent_loss(z_i, z_j, temperature, block_q=block_q, block_k=block_k,
                         matmul_dtype=jnp.float32, exp_dtype=jnp.float32))

        assert jnp.allclose(loss_f32, ref_f32, rtol=5e-3, atol=5e-3), (N, D, loss_f32, ref_f32)
        assert jnp.allclose(loss_perf, ref_bf16, rtol=1e-2, atol=1e-2), (N, D, loss_perf, ref_bf16)
        assert jnp.allclose(loss_perf, ref_f32, rtol=3e-2, atol=3e-2), (N, D, loss_perf, ref_f32)

    # small shape consistent with a SimCLR projection head
    check(8, 128)
    # multi-tile grid: exercises cross-column-tile accumulation and the row split
    check(64, 128, block_q=16, block_k=32)

    print("KERNEL_OK")
</pallas_src>

<mosaic_0001>
module attributes {stable_mosaic.version = 11 : i64} {
  func.func @kernel(%arg0: i32, %arg1: i32, %arg2: memref<8x128xbf16, #tpu.memory_space<vmem>>, %arg3: memref<8x128xbf16, #tpu.memory_space<vmem>>, %arg4: memref<16x128xbf16, #tpu.memory_space<vmem>>, %arg5: memref<8x1xf32, #tpu.memory_space<vmem>>, %arg6: memref<8x1xf32, #tpu.memory_space<vmem>>, %arg7: memref<8x1xf32, #tpu.memory_space<vmem>>, %arg8: memref<8x1xf32, #tpu.memory_space<vmem>>) attributes {dimension_semantics = [#tpu.dimension_semantics<parallel>, #tpu.dimension_semantics<arbitrary>], iteration_bounds = array<i64: 1, 1>, scalar_prefetch = 0 : i64, scratch_operands = 2 : i64, tpu.core_type = #tpu.core_type<tc>, window_params = [{transform_indices = @transform_0, window_bounds = array<i64: 8, 128>}, {transform_indices = @transform_1, window_bounds = array<i64: 8, 128>}, {transform_indices = @transform_2, window_bounds = array<i64: 16, 128>}, {transform_indices = @transform_3, window_bounds = array<i64: 8, 1>}, {transform_indices = @transform_4, window_bounds = array<i64: 8, 1>}]} {
    %c0_i32 = arith.constant 0 : i32
    %0 = arith.cmpi eq, %arg1, %c0_i32 : i32
    %1 = arith.extui %0 : i1 to i32
    %c0_i32_0 = arith.constant 0 : i32
    %2 = arith.cmpi ne, %1, %c0_i32_0 : i32
    scf.if %2 {
      %cst_21 = arith.constant 0.000000e+00 : f32
      %27 = vector.broadcast %cst_21 : f32 to vector<8x1xf32>
      %c0_22 = arith.constant 0 : index
      %c0_23 = arith.constant 0 : index
      %28 = vector.load %arg7[%c0_22, %c0_23] : memref<8x1xf32, #tpu.memory_space<vmem>>, vector<8x1xf32>
      tpu.vector_store %arg7[%c0_22, %c0_23], %27 {strides = array<i32>} : memref<8x1xf32, #tpu.memory_space<vmem>>, vector<8x1xf32>,
      %cst_24 = arith.constant 0.000000e+00 : f32
      %29 = vector.broadcast %cst_24 : f32 to vector<8x1xf32>
      %c0_25 = arith.constant 0 : index
      %c0_26 = arith.constant 0 : index
      %30 = vector.load %arg8[%c0_25, %c0_26] : memref<8x1xf32, #tpu.memory_space<vmem>>, vector<8x1xf32>
      tpu.vector_store %arg8[%c0_25, %c0_26], %29 {strides = array<i32>} : memref<8x1xf32, #tpu.memory_space<vmem>>, vector<8x1xf32>,
    } else {
    }
    %c0 = arith.constant 0 : index
    %c0_1 = arith.constant 0 : index
    %3 = vector.load %arg4[%c0, %c0_1] : memref<16x128xbf16, #tpu.memory_space<vmem>>, vector<16x128xbf16>
    %c0_2 = arith.constant 0 : index
    %c0_3 = arith.constant 0 : index
    %4 = vector.load %arg2[%c0_2, %c0_3] : memref<8x128xbf16, #tpu.memory_space<vmem>>, vector<8x128xbf16>
    %cst = arith.constant dense<0.000000e+00> : vector<8x16xf32>
    %5 = tpu.matmul %4, %3, %cst {dimension_numbers = #tpu.dot_dimension_numbers<[1], [1], [0], [0], [0, 0, 1, 0], [], []>} : vector<8x128xbf16>, vector<16x128xbf16>, vector<8x16xf32> -> vector<8x16xf32>
    %cst_4 = arith.constant 2.000000e+00 : f32
    %6 = vector.broadcast %cst_4 : f32 to vector<8x16xf32>
    %7 = arith.subf %5, %6 : vector<8x16xf32>
    %8 = math.exp %7 : vector<8x16xf32>
    %c0_5 = arith.constant 0 : index
    %c0_6 = arith.constant 0 : index
    %9 = vector.load %arg7[%c0_5, %c0_6] : memref<8x1xf32, #tpu.memory_space<vmem>>, vector<8x1xf32>
    %cst_7 = arith.constant dense<0.000000e+00> : vector<8xf32>
    %10 = vector.multi_reduction <add>, %8, %cst_7 [1] : vector<8x16xf32> to vector<8xf32>
    %11 = vector.shape_cast %10 : vector<8xf32> to vector<8x1xf32>
    %12 = arith.addf %9, %11 : vector<8x1xf32>
    %c0_8 = arith.constant 0 : index
    %c0_9 = arith.constant 0 : index
    %13 = vector.load %arg7[%c0_8, %c0_9] : memref<8x1xf32, #tpu.memory_space<vmem>>, vector<8x1xf32>
    tpu.vector_store %arg7[%c0_8, %c0_9], %12 {strides = array<i32>} : memref<8x1xf32, #tpu.memory_space<vmem>>, vector<8x1xf32>,
    %c0_10 = arith.constant 0 : index
    %c0_11 = arith.constant 0 : index
    %14 = vector.load %arg3[%c0_10, %c0_11] : memref<8x128xbf16, #tpu.memory_space<vmem>>, vector<8x128xbf16>
    %cst_12 = arith.constant dense<0.000000e+00> : vector<8x16xf32>
    %15 = tpu.matmul %14, %3, %cst_12 {dimension_numbers = #tpu.dot_dimension_numbers<[1], [1], [0], [0], [0, 0, 1, 0], [], []>} : vector<8x128xbf16>, vector<16x128xbf16>, vector<8x16xf32> -> vector<8x16xf32>
    %cst_13 = arith.constant 2.000000e+00 : f32
    %16 = vector.broadcast %cst_13 : f32 to vector<8x16xf32>
    %17 = arith.subf %15, %16 : vector<8x16xf32>
    %18 = math.exp %17 : vector<8x16xf32>
    %c0_14 = arith.constant 0 : index
    %c0_15 = arith.constant 0 : index
    %19 = vector.load %arg8[%c0_14, %c0_15] : memref<8x1xf32, #tpu.memory_space<vmem>>, vector<8x1xf32>
    %cst_16 = arith.constant dense<0.000000e+00> : vector<8xf32>
    %20 = vector.multi_reduction <add>, %18, %cst_16 [1] : vector<8x16xf32> to vector<8xf32>
    %21 = vector.shape_cast %20 : vector<8xf32> to vector<8x1xf32>
    %22 = arith.addf %19, %21 : vector<8x1xf32>
    %c0_17 = arith.constant 0 : index
    %c0_18 = arith.constant 0 : index
    %23 = vector.load %arg8[%c0_17, %c0_18] : memref<8x1xf32, #tpu.memory_space<vmem>>, vector<8x1xf32>
    tpu.vector_store %arg8[%c0_17, %c0_18], %22 {strides = array<i32>} : memref<8x1xf32, #tpu.memory_space<vmem>>, vector<8x1xf32>,
    %c0_i32_19 = arith.constant 0 : i32
    %24 = arith.cmpi eq, %arg1, %c0_i32_19 : i32
    %25 = arith.extui %24 : i1 to i32
    %c0_i32_20 = arith.constant 0 : i32
    %26 = arith.cmpi ne, %25, %c0_i32_20 : i32
    scf.if %26 {
      %c0_21 = arith.constant 0 : index
      %c0_22 = arith.constant 0 : index
      %27 = vector.load %arg2[%c0_21, %c0_22] : memref<8x128xbf16, #tpu.memory_space<vmem>>, vector<8x128xbf16>
      %28 = arith.extf %27 : vector<8x128xbf16> to vector<8x128xf32>
      %c0_23 = arith.constant 0 : index
      %c0_24 = arith.constant 0 : index
      %29 = vector.load %arg3[%c0_23, %c0_24] : memref<8x128xbf16, #tpu.memory_space<vmem>>, vector<8x128xbf16>
      %30 = arith.extf %29 : vector<8x128xbf16> to vector<8x128xf32>
      %31 = arith.mulf %28, %30 : vector<8x128xf32>
      %cst_25 = arith.constant dense<0.000000e+00> : vector<8xf32>
      %32 = vector.multi_reduction <add>, %31, %cst_25 [1] : vector<8x128xf32> to vector<8xf32>
      %33 = vector.shape_cast %32 : vector<8xf32> to vector<8x1xf32>
      %cst_26 = arith.constant 5.000000e-01 : f32
      %34 = vector.broadcast %cst_26 : f32 to vector<8x1xf32>
      %35 = arith.mulf %34, %33 : vector<8x1xf32>
      %36 = arith.mulf %28, %28 : vector<8x128xf32>
      %cst_27 = arith.constant dense<0.000000e+00> : vector<8xf32>
      %37 = vector.multi_reduction <add>, %36, %cst_27 [1] : vector<8x128xf32> to vector<8xf32>
      %38 = vector.shape_cast %37 : vector<8xf32> to vector<8x1xf32>
      %cst_28 = arith.constant 5.000000e-01 : f32
      %39 = vector.broadcast %cst_28 : f32 to vector<8x1xf32>
      %40 = arith.mulf %39, %38 : vector<8x1xf32>
      %41 = arith.mulf %30, %30 : vector<8x128xf32>
      %cst_29 = arith.constant dense<0.000000e+00> : vector<8xf32>
      %42 = vector.multi_reduction <add>, %41, %cst_29 [1] : vector<8x128xf32> to vector<8xf32>
      %43 = vector.shape_cast %42 : vector<8xf32> to vector<8x1xf32>
      %cst_30 = arith.constant 5.000000e-01 : f32
      %44 = vector.broadcast %cst_30 : f32 to vector<8x1xf32>
      %45 = arith.mulf %44, %43 : vector<8x1xf32>
      %c0_31 = arith.constant 0 : index
      %c0_32 = arith.constant 0 : index
      %46 = vector.load %arg7[%c0_31, %c0_32] : memref<8x1xf32, #tpu.memory_space<vmem>>, vector<8x1xf32>
      %cst_33 = arith.constant 2.000000e+00 : f32
      %47 = vector.broadcast %cst_33 : f32 to vector<8x1xf32>
      %48 = arith.subf %40, %47 : vector<8x1xf32>
      %49 = math.exp %48 : vector<8x1xf32>
      %50 = arith.subf %46, %49 : vector<8x1xf32>
      %cst_34 = arith.constant 0.000000e+00 : f32
      %51 = vector.broadcast %cst_34 : f32 to vector<8x1xf32>
      %52 = arith.maximumf %50, %51 : vector<8x1xf32>
      %cst_35 = arith.constant 2.000000e+00 : f32
      %53 = vector.broadcast %cst_35 : f32 to vector<8x1xf32>
      %54 = arith.subf %35, %53 : vector<8x1xf32>
      %55 = math.exp %54 : vector<8x1xf32>
      %56 = arith.addf %52, %55 : vector<8x1xf32>
      %57 = math.log %56 : vector<8x1xf32>
      %cst_36 = arith.constant 2.000000e+00 : f32
      %58 = vector.broadcast %cst_36 : f32 to vector<8x1xf32>
      %59 = arith.addf %58, %57 : vector<8x1xf32>
      %60 = arith.subf %59, %35 : vector<8x1xf32>
      %c0_37 = arith.constant 0 : index
      %c0_38 = arith.constant 0 : index
      %61 = vector.load %arg5[%c0_37, %c0_38] : memref<8x1xf32, #tpu.memory_space<vmem>>, vector<8x1xf32>
      tpu.vector_store %arg5[%c0_37, %c0_38], %60 {strides = array<i32>} : memref<8x1xf32, #tpu.memory_space<vmem>>, vector<8x1xf32>,
      %c0_39 = arith.constant 0 : index
      %c0_40 = arith.constant 0 : index
      %62 = vector.load %arg8[%c0_39, %c0_40] : memref<8x1xf32, #tpu.memory_space<vmem>>, vector<8x1xf32>
      %cst_41 = arith.constant 2.000000e+00 : f32
      %63 = vector.broadcast %cst_41 : f32 to vector<8x1xf32>
      %64 = arith.subf %45, %63 : vector<8x1xf32>
      %65 = math.exp %64 : vector<8x1xf32>
      %66 = arith.subf %62, %65 : vector<8x1xf32>
      %cst_42 = arith.constant 0.000000e+00 : f32
      %67 = vector.broadcast %cst_42 : f32 to vector<8x1xf32>
      %68 = arith.maximumf %66, %67 : vector<8x1xf32>
      %cst_43 = arith.constant 2.000000e+00 : f32
      %69 = vector.broadcast %cst_43 : f32 to vector<8x1xf32>
      %70 = arith.subf %35, %69 : vector<8x1xf32>
      %71 = math.exp %70 : vector<8x1xf32>
      %72 = arith.addf %68, %71 : vector<8x1xf32>
      %73 = math.log %72 : vector<8x1xf32>
      %cst_44 = arith.constant 2.000000e+00 : f32
      %74 = vector.broadcast %cst_44 : f32 to vector<8x1xf32>
      %75 = arith.addf %74, %73 : vector<8x1xf32>
      %76 = arith.subf %75, %35 : vector<8x1xf32>
      %c0_45 = arith.constant 0 : index
      %c0_46 = arith.constant 0 : index
      %77 = vector.load %arg6[%c0_45, %c0_46] : memref<8x1xf32, #tpu.memory_space<vmem>>, vector<8x1xf32>
      tpu.vector_store %arg6[%c0_45, %c0_46], %76 {strides = array<i32>} : memref<8x1xf32, #tpu.memory_space<vmem>>, vector<8x1xf32>,
    } else {
    }
    return
  }
  func.func @transform_0(%arg0: i32, %arg1: i32) -> (i32, i32) {
    %c0_i32 = arith.constant 0 : i32
    %c0_i32_0 = arith.constant 0 : i32
    return %arg0, %c0_i32 : i32, i32
  }
  func.func @transform_1(%arg0: i32, %arg1: i32) -> (i32, i32) {
    %c0_i32 = arith.constant 0 : i32
    %c0_i32_0 = arith.constant 0 : i32
    return %arg0, %c0_i32 : i32, i32
  }
  func.func @transform_2(%arg0: i32, %arg1: i32) -> (i32, i32) {
    %c0_i32 = arith.constant 0 : i32
    %c0_i32_0 = arith.constant 0 : i32
    return %arg1, %c0_i32 : i32, i32
  }
  func.func @transform_3(%arg0: i32, %arg1: i32) -> (i32, i32) {
    %c0_i32 = arith.constant 0 : i32
    %c0_i32_0 = arith.constant 0 : i32
    return %arg0, %c0_i32 : i32, i32
  }
  func.func @transform_4(%arg0: i32, %arg1: i32) -> (i32, i32) {
    %c0_i32 = arith.constant 0 : i32
    %c0_i32_0 = arith.constant 0 : i32
    return %arg0, %c0_i32 : i32, i32
  }
}

</mosaic_0001>

<llo_original>
// kernel: tpu_custom_call.1
$region0: #{tpu_custom_call.1}
  #allocation0 [shape = 'u32[]', space=smem, size = 0x4, offset = 0x4, fixed_abs, tag = 'smem constant byte address 0x4 - core index']
  #allocation1 [shape = 'u32[144,128]{1,0:T(1,128)}', space=vmem, size = 0x12000, scoped, tag = 'internal scratch']
  #allocation2 [shape = 'f32[8,1]{1,0:T(8,128)}', space=vmem, size = 0x1000, scoped, tag = 'scratch operand']
  #allocation3 [shape = 'f32[8,1]{1,0:T(8,128)}', space=vmem, size = 0x1000, scoped, tag = 'scratch operand']
  %s0 = inlined_call_operand.hbm [shape: bf16[8,128], index: 0, kind: input, shape index: {}]
  %s1 = inlined_call_operand.hbm [shape: bf16[8,128], index: 1, kind: input, shape index: {}]
  %s2 = inlined_call_operand.hbm [shape: bf16[16,128], index: 2, kind: input, shape index: {}]
  %s3 = inlined_call_operand.vmem [shape: f32[8,1], index: 3, kind: output, shape index: {0}]
  %s4 = inlined_call_operand.vmem [shape: f32[8,1], index: 4, kind: output, shape index: {1}]
  %5 = xla_tuple %s3, %s4
  %s6 = sld [smem:[#allocation0]]
  $region50: #{tpu_custom_call.1} parent=0
    _
  %s8 = ssub.s32 1, %s6
  %s9 = scalar_select 0, %s8, %s6
  $region1: #{tpu_custom_call.1} parent=0
    #allocation4 [shape = 'u8[2048]{0}', space=vmem, size = 0x800, scoped, tag = 'input window, operand 0, single buffered']
    #allocation5 [shape = 's32[1]{0}', space=sflag, size = 0x4, scoped, tag = 'scoped memory for tpu_custom_call.1']
    #allocation6 [shape = 'u8[2048]{0}', space=vmem, size = 0x800, scoped, tag = 'input window, operand 1, single buffered']
    #allocation7 [shape = 's32[1]{0}', space=sflag, size = 0x4, scoped, tag = 'scoped memory for tpu_custom_call.1']
    #allocation8 [shape = 'u8[4096]{0}', space=vmem, size = 0x1000, scoped, tag = 'input window, operand 2, single buffered']
    %10 = vsyncpa [#allocation5], 0
    %11 = vsyncpa [#allocation7], 0
    // Predicated region
    $region2: #{tpu_custom_call.1} parent=1 // pred_check
      _
    $region3: #{tpu_custom_call.1} parent=1 // pred_check_branch
      %13 = sbr.rel (0) target = $region5
    $region4: #{tpu_custom_call.1} parent=1 // pred_region
      %s15 = ssub.s32 64, 64
      %16 = vsyncadd [#allocation5], %s15
      %s18 = sshll.u32 [#allocation4], 4
      %s19 = int_to_ptr.vmem [resolvable:$true] %s18
      %21 = dma.hbm_to_vmem [thread:$0]  %s0, 64, %s19, [#allocation5]
    $region5: #{tpu_custom_call.1} parent=1 // pred_fallthru
      _
    // Predicated region
    $region6: #{tpu_custom_call.1} parent=1 // pred_check
      _
    $region7: #{tpu_custom_call.1} parent=1 // pred_check_branch
      %23 = sbr.rel (0) target = $region9
    $region8: #{tpu_custom_call.1} parent=1 // pred_region
      %s25 = ssub.s32 64, 64
      %26 = vsyncadd [#allocation7], %s25
      %s28 = sshll.u32 [#allocation6], 4
      %s29 = int_to_ptr.vmem [resolvable:$true] %s28
      %31 = dma.hbm_to_vmem [thread:$0]  %s1, 64, %s29, [#allocation7]
    $region9: #{tpu_custom_call.1} parent=1 // pred_fallthru
      _
    // Predicated region
    $region10: #{tpu_custom_call.1} parent=1 // pred_check
      _
    $region11: #{tpu_custom_call.1} parent=1 // pred_check_branch
      %33 = sbr.rel (0) target = $region13
    $region12: #{tpu_custom_call.1} parent=1 // pred_region
      %s35 = ssub.s32 128, 128
      %36 = vsyncadd [#allocation7], %s35
      %s37 = sshll.u32 [#allocation8], 4
      %s38 = int_to_ptr.vmem [resolvable:$true] %s37
      %43 = dma.hbm_to_vmem [thread:$0]  %s2, 128, %s38, [#allocation7], 64, 64, 4
    $region13: #{tpu_custom_call.1} parent=1 // pred_fallthru
      _
    // Predicated region
    $region14: #{tpu_custom_call.1} parent=1 // pred_check
      _
    $region15: #{tpu_custom_call.1} parent=1 // pred_check_branch
      %45 = sbr.rel (0) target = $region17
    $region16: #{tpu_custom_call.1} parent=1 // pred_region
      %46 = dma.done [#allocation5], 64
    $region17: #{tpu_custom_call.1} parent=1 // pred_fallthru
      _
    // Predicated region
    $region18: #{tpu_custom_call.1} parent=1 // pred_check
      _
    $region19: #{tpu_custom_call.1} parent=1 // pred_check_branch
      %48 = sbr.rel (0) target = $region21
    $region20: #{tpu_custom_call.1} parent=1 // pred_region
      %49 = dma.done [#allocation7], 64
    $region21: #{tpu_custom_call.1} parent=1 // pred_fallthru
      _
    // Predicated region
    $region22: #{tpu_custom_call.1} parent=1 // pred_check
      _
    $region23: #{tpu_custom_call.1} parent=1 // pred_check_branch
      %51 = sbr.rel (0) target = $region25
    $region24: #{tpu_custom_call.1} parent=1 // pred_region
      %52 = dma.done [#allocation7], 128
    $region25: #{tpu_custom_call.1} parent=1 // pred_fallthru
      _
    %p54 = scmp.eq.s32.totalorder 0, 0
    // Predicated region
    $region26: #{tpu_custom_call.1} parent=1 // pred_check
      %p55 = pneg %p54
    $region27: #{tpu_custom_call.1} parent=1 // pred_check_branch
      %57 = sbr.rel (%p55) target = $region29
    $region28: #{tpu_custom_call.1} parent=1 // pred_region
      %vm58 = vcmask 7168
      %59 = vst.msk [vmem:[#allocation2] sm:$0xff] %vm58, 0.0
      %60 = vst.msk [vmem:[#allocation3] sm:$0xff] %vm58, 0.0
    $region29: #{tpu_custom_call.1} parent=1 // pred_fallthru
      _
    %v61 = vld [vmem:[#allocation8] sm:$0xf]
    %v62 = vld [vmem:[#allocation8 + $0x4] sm:$0xf]
    %v63 = vld [vmem:[#allocation4] sm:$0xf]
    %v66 = vunpack.c.l.b16 %v61
    %v67 = vunpack.c.l.b16 %v62
    %v68 = vpack.c.b16 %v67, %v66
    %70 = vmatprep.subr.bf16.mxu0 0
    %71 = vmatpush1.bf16.xpose.msra.mxu0 %v68
    %72 = vmatprep.subr.bf16.mxu0 0
    %73 = vmatpush1.bf16.xpose.msra.mxu0 0
    %74 = vmatprep.subr.bf16.mxu0 0
    %75 = vmatpush1.bf16.xpose.msra.mxu0 0
    %76 = vmatprep.subr.bf16.mxu0 0
    %77 = vmatpush1.bf16.xpose.msra.mxu0 0
    %78 = vmatprep.subr.bf16.mxu0 0
    %79 = vmatpush1.bf16.xpose.msra.mxu0 0
    %80 = vmatprep.subr.bf16.mxu0 0
    %81 = vmatpush1.bf16.xpose.msra.mxu0 0
    %82 = vmatprep.subr.bf16.mxu0 0
    %83 = vmatpush1.bf16.xpose.msra.mxu0 0
    %84 = vmatprep.subr.bf16.mxu0 0
    %85 = vmatpush1.bf16.xpose.msra.mxu0 0
    %86 = vmatprep.subr.bf16.mxu0 0
    %87 = vmatpush1.bf16.xpose.msra.mxu0 0
    %88 = vmatprep.subr.bf16.mxu0 0
    %89 = vmatpush1.bf16.xpose.msra.mxu0 0
    %90 = vmatprep.subr.bf16.mxu0 0
    %91 = vmatpush1.bf16.xpose.msra.mxu0 0
    %92 = vmatprep.subr.bf16.mxu0 0
    %93 = vmatpush1.bf16.xpose.msra.mxu0 0
    %94 = vmatprep.subr.bf16.mxu0 0
    %95 = vmatpush1.bf16.xpose.msra.mxu0 0
    %96 = vmatprep.subr.bf16.mxu0 0
    %97 = vmatpush1.bf16.xpose.msra.mxu0 0
    %98 = vmatprep.subr.bf16.mxu0 0
    %99 = vmatpush1.bf16.xpose.msra.mxu0 0
    %100 = vmatprep.subr.bf16.mxu0 0
    %101 = vmatpush1.bf16.xpose.msra.mxu0 0
    %102 = vmatprep.mubr.bf16.mxu0 0
    %103 = vmatmul.mubr.bf16.gmra.mrb[0].mxu0 %v63
    %v104 = vpop.f32.mrb[0].mxu0
    %v105 = vadd.f32 0.0, %v104
    %v106 = vpop.f32.mrb[0].mxu0
    %v107 = vpop.f32.mrb[0].mxu0
    %v108 = vpop.f32.mrb[0].mxu0
    %109 = vdwg.mxu0
    %v110 = vsub.f32 %v105, 2.0
    %v111 = vmul.f32 %v110, 1.442695
    %v112 = vpow.pop %v111
    %v113 = vld [vmem:[#allocation2] sm:$0xff]
    %vm114 = vcmask 130048
    %v115 = vsel %vm114, %v112, 0.0
    %116 = vadd.xlane.f32.xlu0 %v115
    %v117 = vpop.xlane.xlu0 %116
    %v118 = vadd.f32 %v113, %v117
    %vm119 = vcmask 7168
    %120 = vst.msk [vmem:[#allocation2] sm:$0xff] %vm119, %v118
    %v121 = vld [vmem:[#allocation6] sm:$0xf]
    %122 = vmatprep.subr.bf16.mxu0 0
    %123 = vmatpush1.bf16.xpose.msra.mxu0 %v68
    %124 = vmatprep.subr.bf16.mxu0 0
    %125 = vmatpush1.bf16.xpose.msra.mxu0 0
    %126 = vmatprep.subr.bf16.mxu0 0
    %127 = vmatpush1.bf16.xpose.msra.mxu0 0
    %128 = vmatprep.subr.bf16.mxu0 0
    %129 = vmatpush1.bf16.xpose.msra.mxu0 0
    %130 = vmatprep.subr.bf16.mxu0 0
    %131 = vmatpush1.bf16.xpose.msra.mxu0 0
    %132 = vmatprep.subr.bf16.mxu0 0
    %133 = vmatpush1.bf16.xpose.msra.mxu0 0
    %134 = vmatprep.subr.bf16.mxu0 0
    %135 = vmatpush1.bf16.xpose.msra.mxu0 0
    %136 = vmatprep.subr.bf16.mxu0 0
    %137 = vmatpush1.bf16.xpose.msra.mxu0 0
    %138 = vmatprep.subr.bf16.mxu0 0
    %139 = vmatpush1.bf16.xpose.msra.mxu0 0
    %140 = vmatprep.subr.bf16.mxu0 0
    %141 = vmatpush1.bf16.xpose.msra.mxu0 0
    %142 = vmatprep.subr.bf16.mxu0 0
    %143 = vmatpush1.bf16.xpose.msra.mxu0 0
    %144 = vmatprep.subr.bf16.mxu0 0
    %145 = vmatpush1.bf16.xpose.msra.mxu0 0
    %146 = vmatprep.subr.bf16.mxu0 0
    %147 = vmatpush1.bf16.xpose.msra.mxu0 0
    %148 = vmatprep.subr.bf16.mxu0 0
    %149 = vmatpush1.bf16.xpose.msra.mxu0 0
    %150 = vmatprep.subr.bf16.mxu0 0
    %151 = vmatpush1.bf16.xpose.msra.mxu0 0
    %152 = vmatprep.subr.bf16.mxu0 0
    %153 = vmatpush1.bf16.xpose.msra.mxu0 0
    %154 = vmatprep.mubr.bf16.mxu0 0
    %155 = vmatmul.mubr.bf16.gmra.mrb[0].mxu0 %v121
    %v156 = vpop.f32.mrb[0].mxu0
    %v157 = vadd.f32 0.0, %v156
    %v158 = vpop.f32.mrb[0].mxu0
    %v159 = vpop.f32.mrb[0].mxu0
    %v160 = vpop.f32.mrb[0].mxu0
    %161 = vdwg.mxu0
    %v162 = vsub.f32 %v157, 2.0
    %v163 = vmul.f32 %v162, 1.442695
    %v164 = vpow.pop %v163
    %v165 = vld [vmem:[#allocation3] sm:$0xff]
    %v166 = vsel %vm114, %v164, 0.0
    %167 = vadd.xlane.f32.xlu0 %v166
    %v168 = vpop.xlane.xlu0 %167
    %v169 = vadd.f32 %v165, %v168
    %170 = vst.msk [vmem:[#allocation3] sm:$0xff] %vm119, %v169
    // Predicated region
    $region30: #{tpu_custom_call.1} parent=1 // pred_check
      %p171 = pneg %p54
    $region31: #{tpu_custom_call.1} parent=1 // pred_check_branch
      %173 = sbr.rel (%p171) target = $region33
    $region32: #{tpu_custom_call.1} parent=1 // pred_region
      %v174 = vld [vmem:[#allocation4] sm:$0xf]
      %v175 = vunpack.c.l.bf16 %v174
      %v176 = vld [vmem:[#allocation6] sm:$0xf]
      %v177 = vunpack.c.l.bf16 %v176
      %v178 = vmul.f32 %v175, %v177
      %179 = vadd.xlane.f32.xlu0 %v178
      %v180 = vpop.xlane.xlu0 %179
      %v181 = vmul.f32 %v180, 0.5
      %v182 = vmul.f32 %v175, %v175
      %183 = vadd.xlane.f32.xlu0 %v182
      %v184 = vpop.xlane.xlu0 %183
      %v185 = vmul.f32 %v184, 0.5
      %v186 = vmul.f32 %v177, %v177
      %187 = vadd.xlane.f32.xlu0 %v186
      %v188 = vpop.xlane.xlu0 %187
      %v189 = vmul.f32 %v188, 0.5
      %v190 = vld [vmem:[#allocation2] sm:$0xff]
      %v191 = vsub.f32 %v185, 2.0
      %v192 = vmul.f32 %v191, 1.442695
      %v193 = vpow.pop %v192
      %v194 = vsub.f32 %v190, %v193
      %v195 = vmax.f32 %v194, 0.0
      %v196 = vsub.f32 %v181, 2.0
      %v197 = vmul.f32 %v196, 1.442695
      %v198 = vpow.pop %v197
      %v199 = vadd.f32 %v195, %v198
      %v200 = vlog2.pop %v199
      %v201 = vmul.f32 %v200, 0.6931472
      %v202 = vadd.f32 %v201, 2.0
      %v203 = vsub.f32 %v202, %v181
      %204 = vst.msk [vmem:[%s3] sm:$0xff] %vm119, %v203
      %v205 = vld [vmem:[#allocation3] sm:$0xff]
      %v206 = vsub.f32 %v189, 2.0
      %v207 = vmul.f32 %v206, 1.442695
      %v208 = vpow.pop %v207
      %v209 = vsub.f32 %v205, %v208
      %v210 = vmax.f32 %v209, 0.0
      %v211 = vadd.f32 %v210, %v198
      %v212 = vlog2.pop %v211
      %v213 = vmul.f32 %v212, 0.6931472
      %v214 = vadd.f32 %v213, 2.0
      %v215 = vsub.f32 %v214, %v181
      %216 = vst.msk [vmem:[%s4] sm:$0xff] %vm119, %v215
    $region33: #{tpu_custom_call.1} parent=1 // pred_fallthru
      _
    // Predicated region
    $region34: #{tpu_custom_call.1} parent=1 // pred_check
      _
    $region35: #{tpu_custom_call.1} parent=1 // pred_check_branch
      %218 = sbr.rel (0) target = $region37
    $region36: #{tpu_custom_call.1} parent=1 // pred_region
      _
    $region37: #{tpu_custom_call.1} parent=1 // pred_fallthru
      _
    // Predicated region
    $region38: #{tpu_custom_call.1} parent=1 // pred_check
      _
    $region39: #{tpu_custom_call.1} parent=1 // pred_check_branch
      %220 = sbr.rel (0) target = $region41
    $region40: #{tpu_custom_call.1} parent=1 // pred_region
      _
    $region41: #{tpu_custom_call.1} parent=1 // pred_fallthru
      _
    // Predicated region
    $region42: #{tpu_custom_call.1} parent=1 // pred_check
      _
    $region43: #{tpu_custom_call.1} parent=1 // pred_check_branch
      %222 = sbr.rel (0) target = $region45
    $region44: #{tpu_custom_call.1} parent=1 // pred_region
      _
    $region45: #{tpu_custom_call.1} parent=1 // pred_fallthru
      _
    // Predicated region
    $region46: #{tpu_custom_call.1} parent=1 // pred_check
      _
    $region47: #{tpu_custom_call.1} parent=1 // pred_check_branch
      %224 = sbr.rel (0) target = $region49
    $region48: #{tpu_custom_call.1} parent=1 // pred_region
      _
    $region49: #{tpu_custom_call.1} parent=1 // pred_fallthru
      _
    %225 = vsyncpa [#allocation5], 1
    %226 = vsyncpa [#allocation7], 1

</llo_original>
